<compile_context>
chip_gen: v6e
topology: v6e:2x2x1
jax: 0.10.0
libtpu: 0.0.40
codegen_flags: <defaults>
</compile_context>

<pallas_src>
import functools
import math

import jax
import jax.numpy as jnp
from jax.experimental import pallas as pl
from jax.experimental.pallas import tpu as pltpu


def _round_up(x, m):
    return ((x + m - 1) // m) * m


def _gennet_kernel(t_ref, inp_ref, term_ref, pns_ref, pdim_ref, o_ref,
                   *, dim, ns, h, TT):
    # streaming tiles, batch on lanes
    t = t_ref[...]          # (1,  TB) f32
    inp = inp_ref[...]      # (dim,TB) f32
    term = term_ref[...]    # (dim,TB) f32

    # resident packed parameters (all transposed: out-features on sublanes)
    w2_t = pns_ref[:, 0:ns]                               # (ns, ns)
    w3_t = pns_ref[:, ns:2 * ns]                          # (ns, ns)
    w1x_t = pns_ref[:, 2 * ns:2 * ns + dim]               # (ns, dim) (norm folded)
    w1t_t = pns_ref[:, 2 * ns + dim:2 * ns + dim + 1]     # (ns, 1)
    b1_t = pns_ref[:, 2 * ns + dim + 1:2 * ns + dim + 2]  # (ns, 1) (norm folded)
    b2_t = pns_ref[:, 2 * ns + dim + 2:2 * ns + dim + 3]  # (ns, 1)
    b3_t = pns_ref[:, 2 * ns + dim + 3:2 * ns + dim + 4]  # (ns, 1)
    wl_t = pdim_ref[:, 0:ns]                              # (dim, ns)
    bl_t = pdim_ref[:, ns:ns + 1]                          # (dim, 1)

    bf16 = jnp.bfloat16
    inv_TT = 1.0 / TT                     # compile-time constant
    t_norm = t - TT * 0.5                 # (1, TB)

    # lin1(cat([t_norm, inp_norm])) in transposed form:
    #   z1 = W1x^T @ inp  +  W1t^T * t_norm  +  b1        -> (ns, TB)
    z1 = (jnp.dot(w1x_t.astype(bf16), inp.astype(bf16),
                  preferred_element_type=jnp.float32)
          + w1t_t * t_norm + b1_t)
    out = jnp.tanh(z1)

    z2 = jnp.dot(w2_t.astype(bf16), out.astype(bf16),
                 preferred_element_type=jnp.float32) + b2_t
    out = jnp.tanh(out + h * z2)

    z3 = jnp.dot(w3_t.astype(bf16), out.astype(bf16),
                 preferred_element_type=jnp.float32) + b3_t
    out = jnp.tanh(out + h * z3)

    out = jnp.dot(wl_t.astype(bf16), out.astype(bf16),
                  preferred_element_type=jnp.float32) + bl_t   # (dim, TB)

    c1 = t * inv_TT                       # (1, TB)
    c2 = (TT - t) * inv_TT
    c3 = 10.0 * t * (TT - t) * inv_TT
    o_ref[...] = c3 * out + c1 * term + c2 * inp


def gennet_forward(t, inp, samples_terminal, params, mu, std, rand_fill,
                   *, h, TT, tb=2048):
    """Pallas-backed GenNet forward.

    t: (B, 1), inp/samples_terminal: (B, dim).  Weights in (in, out) layout,
    biases (1, out).  Returns (B, dim) float32.
    """
    B, dim = inp.shape
    w1, b1, w2, b2, w3, b3, wl, bl = params
    ns = w2.shape[0]

    # ---- fold per-column normalization into lin1 (wrapper-side, tiny) ----
    #   std!=0: x -> (x - mu)/std     std==0: x -> mu + rand   (constant)
    std = std.astype(jnp.float32)
    mu = mu.astype(jnp.float32)
    std_is_zero = (std == 0.0)
    safe_std = jnp.where(std_is_zero, 1.0, std)
    scale = jnp.where(std_is_zero, 0.0, 1.0 / safe_std)          # (dim,)
    shift = jnp.where(std_is_zero, mu + rand_fill, -mu / safe_std)

    w1t = w1[0:1, :]                      # (1, ns)  time row
    w1x = w1[1:, :]                       # (dim, ns)
    w1x_eff = w1x * scale[:, None]        # fold scale
    b1_eff = b1 + shift[None, :] @ w1x    # fold shift -> (1, ns)

    # ---- pack parameters into two resident slabs (transposed) ----
    par_ns = jnp.concatenate(
        [w2.T, w3.T, w1x_eff.T, w1t.T, b1_eff.T, b2.T, b3.T],
        axis=1).astype(jnp.float32)                               # (ns, 2ns+dim+4)
    par_dim = jnp.concatenate([wl.T, bl.T], axis=1).astype(jnp.float32)  # (dim, ns+1)

    # ---- transpose streams so batch maps to lanes; pad batch to tile ----
    t_row = t.reshape(1, B).astype(jnp.float32)
    inp_T = inp.T.astype(jnp.float32)
    term_T = samples_terminal.T.astype(jnp.float32)

    TB = max(128, min(_round_up(tb, 128), _round_up(B, 128)))
    B_pad = _round_up(B, TB)
    pad = B_pad - B
    if pad:
        t_row = jnp.pad(t_row, ((0, 0), (0, pad)))
        inp_T = jnp.pad(inp_T, ((0, 0), (0, pad)))
        term_T = jnp.pad(term_T, ((0, 0), (0, pad)))

    kernel = functools.partial(_gennet_kernel, dim=dim, ns=ns,
                               h=float(h), TT=float(TT))

    grid_spec = pltpu.PrefetchScalarGridSpec(
        num_scalar_prefetch=0,
        grid=(B_pad // TB,),
        in_specs=[
            pl.BlockSpec((1, TB), lambda i: (0, i)),        # t
            pl.BlockSpec((dim, TB), lambda i: (0, i)),      # inp
            pl.BlockSpec((dim, TB), lambda i: (0, i)),      # terminal samples
            pl.BlockSpec(par_ns.shape, lambda i: (0, 0)),   # resident params (ns,*)
            pl.BlockSpec(par_dim.shape, lambda i: (0, 0)),  # resident params (dim,*)
        ],
        out_specs=pl.BlockSpec((dim, TB), lambda i: (0, i)),
    )

    out_T = pl.pallas_call(
        kernel,
        out_shape=jax.ShapeDtypeStruct((dim, B_pad), jnp.float32),
        grid_spec=grid_spec,
        compiler_params=pltpu.CompilerParams(
            dimension_semantics=("parallel",)),
    )(t_row, inp_T, term_T, par_ns, par_dim)

    return out_T[:, :B].T                                   # back to (B, dim)


def _init_linear(key, fan_in, fan_out):
    """Deterministic PyTorch-style Linear init; weight stored as (in, out)."""
    kw, kb = jax.random.split(key)
    bound = 1.0 / math.sqrt(fan_in)
    w = jax.random.uniform(kw, (fan_in, fan_out), jnp.float32, -bound, bound)
    b = jax.random.uniform(kb, (1, fan_out), jnp.float32, -bound, bound)
    return w, b


def _reference_forward(t, inp, term, params, scale_shift, *, h, TT):
    """Pure-JAX reference mirroring the PyTorch module (f32 everywhere)."""
    scale, shift = scale_shift
    w1, b1, w2, b2, w3, b3, wl, bl = params
    inp_norm = inp * scale + shift
    x = jnp.concatenate([t - TT / 2.0, inp_norm], axis=1)
    out = jnp.tanh(x @ w1 + b1)
    out = jnp.tanh(out + h * (out @ w2 + b2))
    out = jnp.tanh(out + h * (out @ w3 + b3))
    out = out @ wl + bl
    c1 = t / TT
    c2 = (TT - t) / TT
    c3 = 10.0 * t * (TT - t) / TT
    return c3 * out + c1 * term + c2 * inp


if __name__ == "__main__":
    B, dim, ns = 8, 4, 32
    h_step, TT = 0.5, 1.0

    key = jax.random.PRNGKey(0)
    k_t, k_inp, k_term, k_rand, k1, k2, k3, k4 = jax.random.split(key, 8)

    t = jax.random.uniform(k_t, (B, 1), jnp.float32, 0.0, TT)
    inp = jax.random.normal(k_inp, (B, dim), jnp.float32)
    samples_terminal = jax.random.normal(k_term, (B, dim), jnp.float32)

    mu = jnp.array([0.1, -0.2, 0.3, 0.05], jnp.float32)
    std = jnp.array([1.5, 0.0, 2.0, 0.7], jnp.float32)   # one zero-std column
    rand_fill = jax.random.uniform(k_rand, (), jnp.float32)  # stands in for torch.rand(1,1)

    w1, b1 = _init_linear(k1, dim + 1, ns)
    w2, b2 = _init_linear(k2, ns, ns)
    w3, b3 = _init_linear(k3, ns, ns)
    wl, bl = _init_linear(k4, ns, dim)
    params = (w1, b1, w2, b2, w3, b3, wl, bl)

    out = gennet_forward(t, inp, samples_terminal, params, mu, std, rand_fill,
                         h=h_step, TT=TT)
    out = jax.block_until_ready(out)

    # correctness check vs a pure-f32 JAX reference (kernel uses bf16 MXU
    # operands with f32 accumulation, so tolerance is loosened accordingly)
    std_is_zero = (std == 0.0)
    safe_std = jnp.where(std_is_zero, 1.0, std)
    scale = jnp.where(std_is_zero, 0.0, 1.0 / safe_std).reshape(1, dim)
    shift = jnp.where(std_is_zero, mu + rand_fill, -mu / safe_std).reshape(1, dim)
    ref = _reference_forward(t, inp, samples_terminal, params, (scale, shift),
                             h=h_step, TT=TT)
    assert out.shape == (B, dim)
    assert bool(jnp.all(jnp.isfinite(out)))
    assert jnp.allclose(out, ref, atol=1e-1, rtol=0.0), "mismatch vs reference"

    print("KERNEL_OK")
</pallas_src>

<mosaic_0001>
module attributes {stable_mosaic.version = 11 : i64} {
  func.func @_gennet_kernel(%arg0: i32, %arg1: memref<1x128xf32, #tpu.memory_space<vmem>>, %arg2: memref<4x128xf32, #tpu.memory_space<vmem>>, %arg3: memref<4x128xf32, #tpu.memory_space<vmem>>, %arg4: memref<32x72xf32, #tpu.memory_space<vmem>>, %arg5: memref<4x33xf32, #tpu.memory_space<vmem>>, %arg6: memref<4x128xf32, #tpu.memory_space<vmem>>) attributes {dimension_semantics = [#tpu.dimension_semantics<parallel>], iteration_bounds = array<i64: 1>, scalar_prefetch = 0 : i64, scratch_operands = 0 : i64, tpu.core_type = #tpu.core_type<tc>, window_params = [{transform_indices = @transform_0, window_bounds = array<i64: 1, 128>}, {transform_indices = @transform_1, window_bounds = array<i64: 4, 128>}, {transform_indices = @transform_2, window_bounds = array<i64: 4, 128>}, {pipeline_mode = #tpu.pipeline_mode<synchronous>, transform_indices = @transform_3, window_bounds = array<i64: 32, 72>}, {pipeline_mode = #tpu.pipeline_mode<synchronous>, transform_indices = @transform_4, window_bounds = array<i64: 4, 33>}, {transform_indices = @transform_5, window_bounds = array<i64: 4, 128>}]} {
    %c0 = arith.constant 0 : index
    %c0_0 = arith.constant 0 : index
    %0 = vector.load %arg1[%c0, %c0_0] : memref<1x128xf32, #tpu.memory_space<vmem>>, vector<1x128xf32>
    %c0_1 = arith.constant 0 : index
    %c0_2 = arith.constant 0 : index
    %1 = vector.load %arg2[%c0_1, %c0_2] : memref<4x128xf32, #tpu.memory_space<vmem>>, vector<4x128xf32>
    %c0_3 = arith.constant 0 : index
    %c0_4 = arith.constant 0 : index
    %2 = vector.load %arg3[%c0_3, %c0_4] : memref<4x128xf32, #tpu.memory_space<vmem>>, vector<4x128xf32>
    %c0_5 = arith.constant 0 : index
    %c0_6 = arith.constant 0 : index
    %3 = vector.load %arg4[%c0_5, %c0_6] : memref<32x72xf32, #tpu.memory_space<vmem>>, vector<32x32xf32>
    %c0_7 = arith.constant 0 : index
    %c32 = arith.constant 32 : index
    %4 = vector.load %arg4[%c0_7, %c32] : memref<32x72xf32, #tpu.memory_space<vmem>>, vector<32x32xf32>
    %c0_8 = arith.constant 0 : index
    %c64 = arith.constant 64 : index
    %5 = vector.load %arg4[%c0_8, %c64] : memref<32x72xf32, #tpu.memory_space<vmem>>, vector<32x4xf32>
    %c0_9 = arith.constant 0 : index
    %c68 = arith.constant 68 : index
    %6 = vector.load %arg4[%c0_9, %c68] : memref<32x72xf32, #tpu.memory_space<vmem>>, vector<32x1xf32>
    %c0_10 = arith.constant 0 : index
    %c69 = arith.constant 69 : index
    %7 = vector.load %arg4[%c0_10, %c69] : memref<32x72xf32, #tpu.memory_space<vmem>>, vector<32x1xf32>
    %c0_11 = arith.constant 0 : index
    %c70 = arith.constant 70 : index
    %8 = vector.load %arg4[%c0_11, %c70] : memref<32x72xf32, #tpu.memory_space<vmem>>, vector<32x1xf32>
    %c0_12 = arith.constant 0 : index
    %c71 = arith.constant 71 : index
    %9 = vector.load %arg4[%c0_12, %c71] : memref<32x72xf32, #tpu.memory_space<vmem>>, vector<32x1xf32>
    %c0_13 = arith.constant 0 : index
    %c0_14 = arith.constant 0 : index
    %10 = vector.load %arg5[%c0_13, %c0_14] : memref<4x33xf32, #tpu.memory_space<vmem>>, vector<4x32xf32>
    %c0_15 = arith.constant 0 : index
    %c32_16 = arith.constant 32 : index
    %11 = vector.load %arg5[%c0_15, %c32_16] : memref<4x33xf32, #tpu.memory_space<vmem>>, vector<4x1xf32>
    %cst = arith.constant 5.000000e-01 : f32
    %12 = vector.broadcast %cst : f32 to vector<1x128xf32>
    %13 = arith.subf %0, %12 : vector<1x128xf32>
    %14 = arith.truncf %5 : vector<32x4xf32> to vector<32x4xbf16>
    %15 = arith.truncf %1 : vector<4x128xf32> to vector<4x128xbf16>
    %cst_17 = arith.constant dense<0.000000e+00> : vector<32x128xf32>
    %16 = tpu.matmul %14, %15, %cst_17 {dimension_numbers = #tpu.dot_dimension_numbers<[1], [0], [0], [1], [0, 0, 1, 1], [], []>} : vector<32x4xbf16>, vector<4x128xbf16>, vector<32x128xf32> -> vector<32x128xf32>
    %17 = vector.broadcast %6 : vector<32x1xf32> to vector<32x128xf32>
    %18 = vector.broadcast %13 : vector<1x128xf32> to vector<32x128xf32>
    %19 = arith.mulf %17, %18 : vector<32x128xf32>
    %20 = arith.addf %16, %19 : vector<32x128xf32>
    %21 = vector.broadcast %7 : vector<32x1xf32> to vector<32x128xf32>
    %22 = arith.addf %20, %21 : vector<32x128xf32>
    %23 = math.tanh %22 : vector<32x128xf32>
    %24 = arith.truncf %3 : vector<32x32xf32> to vector<32x32xbf16>
    %25 = arith.truncf %23 : vector<32x128xf32> to vector<32x128xbf16>
    %cst_18 = arith.constant dense<0.000000e+00> : vector<32x128xf32>
    %26 = tpu.matmul %24, %25, %cst_18 {dimension_numbers = #tpu.dot_dimension_numbers<[1], [0], [0], [1], [0, 0, 1, 1], [], []>} : vector<32x32xbf16>, vector<32x128xbf16>, vector<32x128xf32> -> vector<32x128xf32>
    %27 = vector.broadcast %8 : vector<32x1xf32> to vector<32x128xf32>
    %28 = arith.addf %26, %27 : vector<32x128xf32>
    %cst_19 = arith.constant 5.000000e-01 : f32
    %29 = vector.broadcast %cst_19 : f32 to vector<32x128xf32>
    %30 = arith.mulf %29, %28 : vector<32x128xf32>
    %31 = arith.addf %23, %30 : vector<32x128xf32>
    %32 = math.tanh %31 : vector<32x128xf32>
    %33 = arith.truncf %4 : vector<32x32xf32> to vector<32x32xbf16>
    %34 = arith.truncf %32 : vector<32x128xf32> to vector<32x128xbf16>
    %cst_20 = arith.constant dense<0.000000e+00> : vector<32x128xf32>
    %35 = tpu.matmul %33, %34, %cst_20 {dimension_numbers = #tpu.dot_dimension_numbers<[1], [0], [0], [1], [0, 0, 1, 1], [], []>} : vector<32x32xbf16>, vector<32x128xbf16>, vector<32x128xf32> -> vector<32x128xf32>
    %36 = vector.broadcast %9 : vector<32x1xf32> to vector<32x128xf32>
    %37 = arith.addf %35, %36 : vector<32x128xf32>
    %cst_21 = arith.constant 5.000000e-01 : f32
    %38 = vector.broadcast %cst_21 : f32 to vector<32x128xf32>
    %39 = arith.mulf %38, %37 : vector<32x128xf32>
    %40 = arith.addf %32, %39 : vector<32x128xf32>
    %41 = math.tanh %40 : vector<32x128xf32>
    %42 = arith.truncf %10 : vector<4x32xf32> to vector<4x32xbf16>
    %43 = arith.truncf %41 : vector<32x128xf32> to vector<32x128xbf16>
    %cst_22 = arith.constant dense<0.000000e+00> : vector<4x128xf32>
    %44 = tpu.matmul %42, %43, %cst_22 {dimension_numbers = #tpu.dot_dimension_numbers<[1], [0], [0], [1], [0, 0, 1, 1], [], []>} : vector<4x32xbf16>, vector<32x128xbf16>, vector<4x128xf32> -> vector<4x128xf32>
    %45 = vector.broadcast %11 : vector<4x1xf32> to vector<4x128xf32>
    %46 = arith.addf %44, %45 : vector<4x128xf32>
    %cst_23 = arith.constant 1.000000e+00 : f32
    %47 = vector.broadcast %cst_23 : f32 to vector<1x128xf32>
    %48 = arith.mulf %0, %47 : vector<1x128xf32>
    %cst_24 = arith.constant 1.000000e+00 : f32
    %49 = vector.broadcast %cst_24 : f32 to vector<1x128xf32>
    %50 = arith.subf %49, %0 : vector<1x128xf32>
    %cst_25 = arith.constant 1.000000e+00 : f32
    %51 = vector.broadcast %cst_25 : f32 to vector<1x128xf32>
    %52 = arith.mulf %50, %51 : vector<1x128xf32>
    %cst_26 = arith.constant 1.000000e+01 : f32
    %53 = vector.broadcast %cst_26 : f32 to vector<1x128xf32>
    %54 = arith.mulf %53, %0 : vector<1x128xf32>
    %cst_27 = arith.constant 1.000000e+00 : f32
    %55 = vector.broadcast %cst_27 : f32 to vector<1x128xf32>
    %56 = arith.subf %55, %0 : vector<1x128xf32>
    %57 = arith.mulf %54, %56 : vector<1x128xf32>
    %cst_28 = arith.constant 1.000000e+00 : f32
    %58 = vector.broadcast %cst_28 : f32 to vector<1x128xf32>
    %59 = arith.mulf %57, %58 : vector<1x128xf32>
    %60 = vector.broadcast %59 : vector<1x128xf32> to vector<4x128xf32>
    %61 = arith.mulf %60, %46 : vector<4x128xf32>
    %62 = vector.broadcast %48 : vector<1x128xf32> to vector<4x128xf32>
    %63 = arith.mulf %62, %2 : vector<4x128xf32>
    %64 = arith.addf %61, %63 : vector<4x128xf32>
    %65 = vector.broadcast %52 : vector<1x128xf32> to vector<4x128xf32>
    %66 = arith.mulf %65, %1 : vector<4x128xf32>
    %67 = arith.addf %64, %66 : vector<4x128xf32>
    %c0_29 = arith.constant 0 : index
    %c0_30 = arith.constant 0 : index
    %68 = vector.load %arg6[%c0_29, %c0_30] : memref<4x128xf32, #tpu.memory_space<vmem>>, vector<4x128xf32>
    tpu.vector_store %arg6[%c0_29, %c0_30], %67 {strides = array<i32>} : memref<4x128xf32, #tpu.memory_space<vmem>>, vector<4x128xf32>,
    return
  }
  func.func @transform_0(%arg0: i32) -> (i32, i32) {
    %c0_i32 = arith.constant 0 : i32
    %c0_i32_0 = arith.constant 0 : i32
    return %c0_i32, %arg0 : i32, i32
  }
  func.func @transform_1(%arg0: i32) -> (i32, i32) {
    %c0_i32 = arith.constant 0 : i32
    %c0_i32_0 = arith.constant 0 : i32
    return %c0_i32, %arg0 : i32, i32
  }
  func.func @transform_2(%arg0: i32) -> (i32, i32) {
    %c0_i32 = arith.constant 0 : i32
    %c0_i32_0 = arith.constant 0 : i32
    return %c0_i32, %arg0 : i32, i32
  }
  func.func @transform_3(%arg0: i32) -> (i32, i32) {
    %c0_i32 = arith.constant 0 : i32
    %c0_i32_0 = arith.constant 0 : i32
    %c0_i32_1 = arith.constant 0 : i32
    return %c0_i32, %c0_i32_0 : i32, i32
  }
  func.func @transform_4(%arg0: i32) -> (i32, i32) {
    %c0_i32 = arith.constant 0 : i32
    %c0_i32_0 = arith.constant 0 : i32
    %c0_i32_1 = arith.constant 0 : i32
    return %c0_i32, %c0_i32_0 : i32, i32
  }
  func.func @transform_5(%arg0: i32) -> (i32, i32) {
    %c0_i32 = arith.constant 0 : i32
    %c0_i32_0 = arith.constant 0 : i32
    return %c0_i32, %arg0 : i32, i32
  }
}

</mosaic_0001>

<llo_original>
// kernel: tpu_custom_call.1
$region0: #{tpu_custom_call.1}
  #allocation0 [shape = 'u32[]', space=smem, size = 0x4, offset = 0x4, fixed_abs, tag = 'smem constant byte address 0x4 - core index']
  #allocation1 [shape = 'u32[144,128]{1,0:T(1,128)}', space=vmem, size = 0x12000, scoped, tag = 'internal scratch']
  %s0 = inlined_call_operand.hbm [shape: f32[1,128], index: 0, kind: input, shape index: {}]
  %s1 = inlined_call_operand.hbm [shape: f32[4,128], index: 1, kind: input, shape index: {}]
  %s2 = inlined_call_operand.hbm [shape: f32[4,128], index: 2, kind: input, shape index: {}]
  %s3 = inlined_call_operand.hbm [shape: f32[32,72], index: 3, kind: input, shape index: {}]
  %s4 = inlined_call_operand.vmem [shape: f32[4,33], index: 4, kind: input, shape index: {}]
  %s5 = inlined_call_operand.hbm [shape: f32[4,128], index: 5, kind: output, shape index: {}]
  %s6 = sld [smem:[#allocation0]]
  $region46: #{tpu_custom_call.1} parent=0
    _
  %s8 = ssub.s32 1, %s6
  %s9 = scalar_select 0, %s8, %s6
  $region1: #{tpu_custom_call.1} parent=0
    #allocation2 [shape = 'u8[512]{0}', space=vmem, size = 0x400, scoped, tag = 'input window, operand 0, single buffered']
    #allocation3 [shape = 's32[1]{0}', space=sflag, size = 0x4, scoped, tag = 'scoped memory for tpu_custom_call.1']
    #allocation4 [shape = 's32[1]{0}', space=sflag, size = 0x4, scoped, tag = 'scoped memory for tpu_custom_call.1']
    #allocation5 [shape = 'u8[2048]{0}', space=vmem, size = 0x800, scoped, tag = 'input window, operand 1, single buffered']
    #allocation6 [shape = 's32[1]{0}', space=sflag, size = 0x4, scoped, tag = 'scoped memory for tpu_custom_call.1']
    #allocation7 [shape = 'u8[2048]{0}', space=vmem, size = 0x800, scoped, tag = 'input window, operand 2, single buffered']
    #allocation8 [shape = 'u8[16384]{0}', space=vmem, size = 0x4000, scoped, tag = 'input window, operand 3, single buffered']
    #allocation9 [shape = 's32[1]{0}', space=sflag, size = 0x4, scoped, tag = 'scoped memory for tpu_custom_call.1']
    #allocation10 [shape = 'u8[2048]{0}', space=vmem, size = 0x800, scoped, tag = 'output window, operand 0, single buffered']
    %10 = vsyncpa [#allocation3], 0
    %11 = vsyncpa [#allocation6], 0
    %12 = vsyncpa [#allocation9], 0
    %13 = vsyncpa [#allocation4], 0
    // Predicated region
    $region2: #{tpu_custom_call.1} parent=1 // pred_check
      _
    $region3: #{tpu_custom_call.1} parent=1 // pred_check_branch
      %15 = sbr.rel (0) target = $region5
    $region4: #{tpu_custom_call.1} parent=1 // pred_region
      %s17 = ssub.s32 16, 16
      %18 = vsyncadd [#allocation3], %s17
      %s20 = sshll.u32 [#allocation2], 4
      %s21 = int_to_ptr.vmem [resolvable:$true] %s20
      %23 = dma.hbm_to_vmem [thread:$0]  %s0, 16, %s21, [#allocation3]
    $region5: #{tpu_custom_call.1} parent=1 // pred_fallthru
      _
    // Predicated region
    $region6: #{tpu_custom_call.1} parent=1 // pred_check
      _
    $region7: #{tpu_custom_call.1} parent=1 // pred_check_branch
      %25 = sbr.rel (0) target = $region9
    $region8: #{tpu_custom_call.1} parent=1 // pred_region
      %s27 = ssub.s32 64, 64
      %28 = vsyncadd [#allocation6], %s27
      %s30 = sshll.u32 [#allocation5], 4
      %s31 = int_to_ptr.vmem [resolvable:$true] %s30
      %33 = dma.hbm_to_vmem [thread:$0]  %s1, 64, %s31, [#allocation6]
    $region9: #{tpu_custom_call.1} parent=1 // pred_fallthru
      _
    // Predicated region
    $region10: #{tpu_custom_call.1} parent=1 // pred_check
      _
    $region11: #{tpu_custom_call.1} parent=1 // pred_check_branch
      %35 = sbr.rel (0) target = $region13
    $region12: #{tpu_custom_call.1} parent=1 // pred_region
      %s37 = ssub.s32 64, 64
      %38 = vsyncadd [#allocation6], %s37
      %s40 = sshll.u32 [#allocation7], 4
      %s41 = int_to_ptr.vmem [resolvable:$true] %s40
      %43 = dma.hbm_to_vmem [thread:$0]  %s2, 64, %s41, [#allocation6]
    $region13: #{tpu_custom_call.1} parent=1 // pred_fallthru
      _
    // Predicated region
    $region14: #{tpu_custom_call.1} parent=1 // pred_check
      _
    $region15: #{tpu_custom_call.1} parent=1 // pred_check_branch
      %45 = sbr.rel (0) target = $region17
    $region16: #{tpu_custom_call.1} parent=1 // pred_region
      %s47 = ssub.s32 512, 512
      %48 = vsyncadd [#allocation9], %s47
      %s49 = sshll.u32 [#allocation8], 4
      %s50 = int_to_ptr.vmem [resolvable:$true] %s49
      %55 = dma.hbm_to_vmem [thread:$0]  %s3, 512, %s50, [#allocation9], 128, 128, 8
    $region17: #{tpu_custom_call.1} parent=1 // pred_fallthru
      _
    // Predicated region
    $region18: #{tpu_custom_call.1} parent=1 // pred_check
      _
    $region19: #{tpu_custom_call.1} parent=1 // pred_check_branch
      %57 = sbr.rel (0) target = $region21
    $region20: #{tpu_custom_call.1} parent=1 // pred_region
      _
    $region21: #{tpu_custom_call.1} parent=1 // pred_fallthru
      _
    // Predicated region
    $region22: #{tpu_custom_call.1} parent=1 // pred_check
      _
    $region23: #{tpu_custom_call.1} parent=1 // pred_check_branch
      %59 = sbr.rel (0) target = $region25
    $region24: #{tpu_custom_call.1} parent=1 // pred_region
      %60 = dma.done [#allocation3], 16
    $region25: #{tpu_custom_call.1} parent=1 // pred_fallthru
      _
    // Predicated region
    $region26: #{tpu_custom_call.1} parent=1 // pred_check
      _
    $region27: #{tpu_custom_call.1} parent=1 // pred_check_branch
      %62 = sbr.rel (0) target = $region29
    $region28: #{tpu_custom_call.1} parent=1 // pred_region
      %63 = dma.done [#allocation6], 64
    $region29: #{tpu_custom_call.1} parent=1 // pred_fallthru
      _
    // Predicated region
    $region30: #{tpu_custom_call.1} parent=1 // pred_check
      _
    $region31: #{tpu_custom_call.1} parent=1 // pred_check_branch
      %65 = sbr.rel (0) target = $region33
    $region32: #{tpu_custom_call.1} parent=1 // pred_region
      %66 = dma.done [#allocation6], 64
    $region33: #{tpu_custom_call.1} parent=1 // pred_fallthru
      _
    // Predicated region
    $region34: #{tpu_custom_call.1} parent=1 // pred_check
      _
    $region35: #{tpu_custom_call.1} parent=1 // pred_check_branch
      %68 = sbr.rel (0) target = $region37
    $region36: #{tpu_custom_call.1} parent=1 // pred_region
      %69 = dma.done [#allocation9], 512
    $region37: #{tpu_custom_call.1} parent=1 // pred_fallthru
      _
    %v71 = vld [vmem:[#allocation2] sm:$0x1]
    %v72 = vld [vmem:[#allocation5] sm:$0xf]
    %v73 = vld [vmem:[#allocation7] sm:$0xf]
    %v74 = vld [vmem:[#allocation8] sm:$0xff]
    %v75 = vld [vmem:[#allocation8 + $0x8] sm:$0xff]
    %v76 = vld [vmem:[#allocation8 + $0x10] sm:$0xff]
    %v77 = vld [vmem:[#allocation8 + $0x18] sm:$0xff]
    %v78 = vld [vmem:[%s4] sm:$0xf]
    %v79 = vsub.f32 %v71, 0.5
    %v80 = vpack.c.bf16 %v75, %v74
    %v81 = vpack.c.bf16 %v77, %v76
    %v82 = vpack.c.bf16 %v72, %v72
    %84 = vset.pattern.permute.xlu0 68
    %85 = vperm.xlu0 %84, %v74
    %v86 = vpop.permute.xlu0 %85
    %89 = vset.pattern.permute.xlu0 68
    %90 = vperm.xlu0 %89, %v75
    %v91 = vpop.permute.xlu0 %90
    %94 = vset.pattern.permute.xlu0 68
    %95 = vperm.xlu0 %94, %v76
    %v96 = vpop.permute.xlu0 %95
    %99 = vset.pattern.permute.xlu0 68
    %100 = vperm.xlu0 %99, %v77
    %v101 = vpop.permute.xlu0 %100
    %v104 = vlaneseq
    %v105 = vshrl.u32 %v104, 7
    %v106 = vsub.s32 0, %v105
    %v107 = vrot.slane %v79, %v106
    %v109 = vmul.f32 %v86, %v107
    %v110 = vmul.f32 %v91, %v107
    %v111 = vmul.f32 %v96, %v107
    %v112 = vmul.f32 %v101, %v107
    %115 = vrot.lane.b32.xlu0 %v80, 64
    %v116 = vpop.permute.xlu0 %115
    %117 = vrot.lane.b32.xlu0 %v81, 64
    %v118 = vpop.permute.xlu0 %117
    %vm119 = vcmask 31744
    %v121 = vsel %vm119, %v116, 0
    %v124 = vsel %vm119, %v118, 0
    %vm126 = vcmask 1041408
    %v128 = vsel %vm126, %v82, 0
    %130 = vmatprep.subr.bf16.mxu0 0
    %131 = vmatpush1.bf16.msra.mxu0 0
    %132 = vmatprep.subr.bf16.mxu0 0
    %133 = vmatpush1.bf16.msra.mxu0 0
    %134 = vmatprep.subr.bf16.mxu0 0
    %135 = vmatpush1.bf16.msra.mxu0 0
    %136 = vmatprep.subr.bf16.mxu0 0
    %137 = vmatpush1.bf16.msra.mxu0 0
    %138 = vmatprep.subr.bf16.mxu0 0
    %139 = vmatpush1.bf16.msra.mxu0 0
    %140 = vmatprep.subr.bf16.mxu0 0
    %141 = vmatpush1.bf16.msra.mxu0 0
    %142 = vmatprep.subr.bf16.mxu0 0
    %143 = vmatpush1.bf16.msra.mxu0 0
    %144 = vmatprep.subr.bf16.mxu0 0
    %145 = vmatpush1.bf16.msra.mxu0 %v128
    %146 = vmatprep.subr.bf16.mxu0 0
    %147 = vmatpush2.bf16.msra.mxu0 0
    %148 = vmatprep.subr.bf16.mxu0 0
    %149 = vmatpush2.bf16.msra.mxu0 0
    %150 = vmatprep.subr.bf16.mxu0 0
    %151 = vmatpush2.bf16.msra.mxu0 0
    %152 = vmatprep.subr.bf16.mxu0 0
    %153 = vmatpush2.bf16.msra.mxu0 0
    %154 = vmatprep.subr.bf16.mxu0 0
    %155 = vmatpush2.bf16.msra.mxu0 0
    %156 = vmatprep.subr.bf16.mxu0 0
    %157 = vmatpush2.bf16.msra.mxu0 0
    %158 = vmatprep.subr.bf16.mxu0 0
    %159 = vmatpush2.bf16.msra.mxu0 0
    %160 = vmatprep.subr.bf16.mxu0 0
    %161 = vmatpush2.bf16.msra.mxu0 0
    %162 = vmatprep.mubr.bf16.mxu0 0
    %163 = vmatmul.mubr.bf16.gmra.mxu0 %v121
    %v164 = vpop.f32.mrf.mxu0
    %v165 = vadd.f32 %v109, %v164
    %v166 = vpop.f32.mrf.mxu0
    %v167 = vpop.f32.mrf.mxu0
    %v168 = vadd.f32 %v110, %v167
    %v169 = vpop.f32.mrf.mxu0
    %170 = vmatprep.mubr.bf16.mxu0 0
    %171 = vmatmul.mubr.bf16.gmra.mxu0 %v124
    %v172 = vpop.f32.mrf.mxu0
    %v173 = vadd.f32 %v111, %v172
    %v174 = vpop.f32.mrf.mxu0
    %v175 = vpop.f32.mrf.mxu0
    %v176 = vadd.f32 %v112, %v175
    %v177 = vpop.f32.mrf.mxu0
    %178 = vdwg.mxu0
    %179 = vset.pattern.permute.xlu0 69
    %180 = vperm.xlu0 %179, %v74
    %v181 = vpop.permute.xlu0 %180
    %183 = vset.pattern.permute.xlu0 69
    %184 = vperm.xlu0 %183, %v75
    %v185 = vpop.permute.xlu0 %184
    %187 = vset.pattern.permute.xlu0 69
    %188 = vperm.xlu0 %187, %v76
    %v189 = vpop.permute.xlu0 %188
    %191 = vset.pattern.permute.xlu0 69
    %192 = vperm.xlu0 %191, %v77
    %v193 = vpop.permute.xlu0 %192
    %v195 = vadd.f32 %v165, %v181
    %v196 = vadd.f32 %v168, %v185
    %v197 = vadd.f32 %v173, %v189
    %v198 = vadd.f32 %v176, %v193
    %v199 = vtanh.pop %v195
    %v200 = vtanh.pop %v196
    %v201 = vtanh.pop %v197
    %v202 = vtanh.pop %v198
    %v203 = vpack.c.bf16 %v200, %v199
    %v204 = vpack.c.bf16 %v202, %v201
    %205 = vset.pattern.permute.xlu0 70
    %206 = vperm.xlu0 %205, %v74
    %v207 = vpop.permute.xlu0 %206
    %209 = vset.pattern.permute.xlu0 70
    %210 = vperm.xlu0 %209, %v75
    %v211 = vpop.permute.xlu0 %210
    %213 = vset.pattern.permute.xlu0 70
    %214 = vperm.xlu0 %213, %v76
    %v215 = vpop.permute.xlu0 %214
    %217 = vset.pattern.permute.xlu0 70
    %218 = vperm.xlu0 %217, %v77
    %v219 = vpop.permute.xlu0 %218
    %vm221 = vcmask 261120
    %v223 = vsel %vm221, %v80, 0
    %v226 = vsel %vm221, %v81, 0
    %228 = vmatprep.subr.bf16.mxu0 0
    %229 = vmatpush1.bf16.msra.mxu0 0
    %230 = vmatprep.subr.bf16.mxu0 0
    %231 = vmatpush1.bf16.msra.mxu0 0
    %232 = vmatprep.subr.bf16.mxu0 0
    %233 = vmatpush1.bf16.msra.mxu0 0
    %234 = vmatprep.subr.bf16.mxu0 0
    %235 = vmatpush1.bf16.msra.mxu0 0
    %236 = vmatprep.subr.bf16.mxu0 0
    %237 = vmatpush1.bf16.msra.mxu0 0
    %238 = vmatprep.subr.bf16.mxu0 0
    %239 = vmatpush1.bf16.msra.mxu0 0
    %240 = vmatprep.subr.bf16.mxu0 0
    %241 = vmatpush1.bf16.msra.mxu0 %v204
    %242 = vmatprep.subr.bf16.mxu0 0
    %243 = vmatpush1.bf16.msra.mxu0 %v203
    %244 = vmatprep.subr.bf16.mxu0 0
    %245 = vmatpush2.bf16.msra.mxu0 0
    %246 = vmatprep.subr.bf16.mxu0 0
    %247 = vmatpush2.bf16.msra.mxu0 0
    %248 = vmatprep.subr.bf16.mxu0 0
    %249 = vmatpush2.bf16.msra.mxu0 0
    %250 = vmatprep.subr.bf16.mxu0 0
    %251 = vmatpush2.bf16.msra.mxu0 0
    %252 = vmatprep.subr.bf16.mxu0 0
    %253 = vmatpush2.bf16.msra.mxu0 0
    %254 = vmatprep.subr.bf16.mxu0 0
    %255 = vmatpush2.bf16.msra.mxu0 0
    %256 = vmatprep.subr.bf16.mxu0 0
    %257 = vmatpush2.bf16.msra.mxu0 0
    %258 = vmatprep.subr.bf16.mxu0 0
    %259 = vmatpush2.bf16.msra.mxu0 0
    %260 = vmatprep.mubr.bf16.mxu0 0
    %261 = vmatmul.mubr.bf16.gmra.mxu0 %v223
    %v262 = vpop.f32.mrf.mxu0
    %v263 = vadd.f32 %v207, %v262
    %v264 = vpop.f32.mrf.mxu0
    %v265 = vpop.f32.mrf.mxu0
    %v266 = vadd.f32 %v211, %v265
    %v267 = vpop.f32.mrf.mxu0
    %268 = vmatprep.mubr.bf16.mxu0 0
    %269 = vmatmul.mubr.bf16.gmra.mxu0 %v226
    %v270 = vpop.f32.mrf.mxu0
    %v271 = vadd.f32 %v215, %v270
    %v272 = vpop.f32.mrf.mxu0
    %v273 = vpop.f32.mrf.mxu0
    %v274 = vadd.f32 %v219, %v273
    %v275 = vpop.f32.mrf.mxu0
    %276 = vdwg.mxu0
    %v277 = vmul.f32 %v263, 0.5
    %v278 = vmul.f32 %v266, 0.5
    %v279 = vmul.f32 %v271, 0.5
    %v280 = vmul.f32 %v274, 0.5
    %v281 = vadd.f32 %v199, %v277
    %v282 = vadd.f32 %v200, %v278
    %v283 = vadd.f32 %v201, %v279
    %v284 = vadd.f32 %v202, %v280
    %v285 = vtanh.pop %v281
    %v286 = vtanh.pop %v282
    %v287 = vtanh.pop %v283
    %v288 = vtanh.pop %v284
    %v289 = vpack.c.bf16 %v286, %v285
    %v290 = vpack.c.bf16 %v288, %v287
    %291 = vset.pattern.permute.xlu0 71
    %292 = vperm.xlu0 %291, %v74
    %v293 = vpop.permute.xlu0 %292
    %295 = vset.pattern.permute.xlu0 71
    %296 = vperm.xlu0 %295, %v75
    %v297 = vpop.permute.xlu0 %296
    %299 = vset.pattern.permute.xlu0 71
    %300 = vperm.xlu0 %299, %v76
    %v301 = vpop.permute.xlu0 %300
    %303 = vset.pattern.permute.xlu0 71
    %304 = vperm.xlu0 %303, %v77
    %v305 = vpop.permute.xlu0 %304
    %307 = vrot.lane.b32.xlu0 %v80, 96
    %v308 = vpop.permute.xlu0 %307
    %309 = vrot.lane.b32.xlu0 %v81, 96
    %v310 = vpop.permute.xlu0 %309
    %v312 = vsel %vm221, %v308, 0
    %v315 = vsel %vm221, %v310, 0
    %317 = vmatprep.subr.bf16.mxu0 0
    %318 = vmatpush1.bf16.msra.mxu0 0
    %319 = vmatprep.subr.bf16.mxu0 0
    %320 = vmatpush1.bf16.msra.mxu0 0
    %321 = vmatprep.subr.bf16.mxu0 0
    %322 = vmatpush1.bf16.msra.mxu0 0
    %323 = vmatprep.subr.bf16.mxu0 0
    %324 = vmatpush1.bf16.msra.mxu0 0
    %325 = vmatprep.subr.bf16.mxu0 0
    %326 = vmatpush1.bf16.msra.mxu0 0
    %327 = vmatprep.subr.bf16.mxu0 0
    %328 = vmatpush1.bf16.msra.mxu0 0
    %329 = vmatprep.subr.bf16.mxu0 0
    %330 = vmatpush1.bf16.msra.mxu0 %v290
    %331 = vmatprep.subr.bf16.mxu0 0
    %332 = vmatpush1.bf16.msra.mxu0 %v289
    %333 = vmatprep.subr.bf16.mxu0 0
    %334 = vmatpush2.bf16.msra.mxu0 0
    %335 = vmatprep.subr.bf16.mxu0 0
    %336 = vmatpush2.bf16.msra.mxu0 0
    %337 = vmatprep.subr.bf16.mxu0 0
    %338 = vmatpush2.bf16.msra.mxu0 0
    %339 = vmatprep.subr.bf16.mxu0 0
    %340 = vmatpush2.bf16.msra.mxu0 0
    %341 = vmatprep.subr.bf16.mxu0 0
    %342 = vmatpush2.bf16.msra.mxu0 0
    %343 = vmatprep.subr.bf16.mxu0 0
    %344 = vmatpush2.bf16.msra.mxu0 0
    %345 = vmatprep.subr.bf16.mxu0 0
    %346 = vmatpush2.bf16.msra.mxu0 0
    %347 = vmatprep.subr.bf16.mxu0 0
    %348 = vmatpush2.bf16.msra.mxu0 0
    %349 = vmatprep.mubr.bf16.mxu0 0
    %350 = vmatmul.mubr.bf16.gmra.mxu0 %v312
    %v351 = vpop.f32.mrf.mxu0
    %v352 = vadd.f32 %v293, %v351
    %v353 = vpop.f32.mrf.mxu0
    %v354 = vpop.f32.mrf.mxu0
    %v355 = vadd.f32 %v297, %v354
    %v356 = vpop.f32.mrf.mxu0
    %357 = vmatprep.mubr.bf16.mxu0 0
    %358 = vmatmul.mubr.bf16.gmra.mxu0 %v315
    %v359 = vpop.f32.mrf.mxu0
    %v360 = vadd.f32 %v301, %v359
    %v361 = vpop.f32.mrf.mxu0
    %v362 = vpop.f32.mrf.mxu0
    %v363 = vadd.f32 %v305, %v362
    %v364 = vpop.f32.mrf.mxu0
    %365 = vdwg.mxu0
    %v366 = vmul.f32 %v352, 0.5
    %v367 = vmul.f32 %v355, 0.5
    %v368 = vmul.f32 %v360, 0.5
    %v369 = vmul.f32 %v363, 0.5
    %v370 = vadd.f32 %v285, %v366
    %v371 = vadd.f32 %v286, %v367
    %v372 = vadd.f32 %v287, %v368
    %v373 = vadd.f32 %v288, %v369
    %v374 = vtanh.pop %v370
    %v375 = vtanh.pop %v371
    %v376 = vtanh.pop %v372
    %v377 = vtanh.pop %v373
    %v378 = vpack.c.bf16 %v78, %v78
    %v379 = vpack.c.bf16 %v375, %v374
    %v380 = vpack.c.bf16 %v377, %v376
    %382 = vset.pattern.permute.xlu0 32
    %383 = vperm.xlu0 %382, %v78
    %v384 = vpop.permute.xlu0 %383
    %v387 = vsel %vm221, %v378, 0
    %389 = vmatprep.subr.bf16.mxu0 0
    %390 = vmatpush1.bf16.msra.mxu0 0
    %391 = vmatprep.subr.bf16.mxu0 0
    %392 = vmatpush1.bf16.msra.mxu0 0
    %393 = vmatprep.subr.bf16.mxu0 0
    %394 = vmatpush1.bf16.msra.mxu0 0
    %395 = vmatprep.subr.bf16.mxu0 0
    %396 = vmatpush1.bf16.msra.mxu0 0
    %397 = vmatprep.subr.bf16.mxu0 0
    %398 = vmatpush1.bf16.msra.mxu0 0
    %399 = vmatprep.subr.bf16.mxu0 0
    %400 = vmatpush1.bf16.msra.mxu0 0
    %401 = vmatprep.subr.bf16.mxu0 0
    %402 = vmatpush1.bf16.msra.mxu0 %v380
    %403 = vmatprep.subr.bf16.mxu0 0
    %404 = vmatpush1.bf16.msra.mxu0 %v379
    %405 = vmatprep.subr.bf16.mxu0 0
    %406 = vmatpush2.bf16.msra.mxu0 0
    %407 = vmatprep.subr.bf16.mxu0 0
    %408 = vmatpush2.bf16.msra.mxu0 0
    %409 = vmatprep.subr.bf16.mxu0 0
    %410 = vmatpush2.bf16.msra.mxu0 0
    %411 = vmatprep.subr.bf16.mxu0 0
    %412 = vmatpush2.bf16.msra.mxu0 0
    %413 = vmatprep.subr.bf16.mxu0 0
    %414 = vmatpush2.bf16.msra.mxu0 0
    %415 = vmatprep.subr.bf16.mxu0 0
    %416 = vmatpush2.bf16.msra.mxu0 0
    %417 = vmatprep.subr.bf16.mxu0 0
    %418 = vmatpush2.bf16.msra.mxu0 0
    %419 = vmatprep.subr.bf16.mxu0 0
    %420 = vmatpush2.bf16.msra.mxu0 0
    %421 = vmatprep.mubr.bf16.mxu0 0
    %422 = vmatmul.mubr.bf16.gmra.mxu0 %v387
    %v423 = vpop.f32.mrf.mxu0
    %v424 = vadd.f32 %v384, %v423
    %v425 = vpop.f32.mrf.mxu0
    %v426 = vpop.f32.mrf.mxu0
    %v427 = vpop.f32.mrf.mxu0
    %428 = vdwg.mxu0
    %v429 = vsub.f32 1.0, %v71
    %v430 = vmul.f32 %v71, 10.0
    %v431 = vmul.f32 %v430, %v429
    %v433 = vlaneseq
    %v434 = vshrl.u32 %v433, 7
    %v435 = vsub.s32 0, %v434
    %v436 = vrot.slane %v431, %v435
    %v438 = vmul.f32 %v436, %v424
    %v440 = vlaneseq
    %v441 = vshrl.u32 %v440, 7
    %v442 = vsub.s32 0, %v441
    %v443 = vrot.slane %v71, %v442
    %v445 = vmul.f32 %v443, %v73
    %v446 = vadd.f32 %v438, %v445
    %v448 = vlaneseq
    %v449 = vshrl.u32 %v448, 7
    %v450 = vsub.s32 0, %v449
    %v451 = vrot.slane %v429, %v450
    %v453 = vmul.f32 %v451, %v72
    %v454 = vadd.f32 %v446, %v453
    %455 = vst [vmem:[#allocation10] sm:$0xf] %v454
    // Predicated region
    $region38: #{tpu_custom_call.1} parent=1 // pred_check
      _
    $region39: #{tpu_custom_call.1} parent=1 // pred_check_branch
      %457 = sbr.rel (0) target = $region41
    $region40: #{tpu_custom_call.1} parent=1 // pred_region
      %s459 = ssub.s32 64, 64
      %460 = vsyncadd [#allocation4], %s459
      %s462 = sshll.u32 [#allocation10], 4
      %s463 = int_to_ptr.vmem [resolvable:$true] %s462
      %465 = dma.vmem_to_hbm [thread:$0]  %s463, 64, %s5, [#allocation4]
    $region41: #{tpu_custom_call.1} parent=1 // pred_fallthru
      _
    // Predicated region
    $region42: #{tpu_custom_call.1} parent=1 // pred_check
      _
    $region43: #{tpu_custom_call.1} parent=1 // pred_check_branch
      %467 = sbr.rel (0) target = $region45
    $region44: #{tpu_custom_call.1} parent=1 // pred_region
      %468 = dma.done [#allocation4], 64
    $region45: #{tpu_custom_call.1} parent=1 // pred_fallthru
      _
    %469 = vsyncpa [#allocation3], 1
    %470 = vsyncpa [#allocation6], 1
    %471 = vsyncpa [#allocation9], 1
    %472 = vsyncpa [#allocation4], 1

</llo_original>
